<compile_context>
chip_gen: v6e
topology: v6e:2x2x1
jax: 0.10.0
libtpu: 0.0.40
codegen_flags: <defaults>
</compile_context>

<pallas_src>
import functools

import jax
import jax.numpy as jnp
from jax.experimental import pallas as pl
from jax.experimental.pallas import tpu as pltpu


def _round_up(x, m):
    return (x + m - 1) // m * m


def _fused_block_kernel(x_ref, w1_ref, w2_ref, m_ref, o_ref, patch_ref, *,
                        K, Cp, shifts, mm_dtype):
    """Fused Conv(K,'same') -> ReLU -> Conv(K,'same') on one lane-dense slab.

      x_ref     : (1, Cp, L)        channel-padded input, spatial (+batch) in lanes
      w1_ref    : (Cp,   K*K*Cp+8)  conv1 weights + bias column   (mm_dtype)
      w2_ref    : (Cout, K*K*Cp+8)  conv2 weights + bias column   (mm_dtype)
      m_ref     : (K*K, L)          per-tap validity masks (1.0/0.0), f32
      o_ref     : (1, Cout, L)      output (lane dense)
      patch_ref : (K*K*Cp+8, L)     f32 im2col scratch; last 8 rows = bias slab
    """
    KK = K * K
    L = x_ref.shape[-1]
    nrows = KK * Cp

    # Bias slab: single aligned (8, L) store.  Row 0 = ones (multiplies the
    # bias column of w), rows 1..7 = zeros.  Written unconditionally every grid
    # step — scratch is per-core, never rely on first-step-only init under
    # "parallel" partitioning.
    rid = jax.lax.broadcasted_iota(jnp.int32, (8, L), 0)
    patch_ref[nrows:nrows + 8, :] = (rid == 0).astype(jnp.float32)

    # Hoist the per-tap masks once (reused by both convs).
    masks = [m_ref[t:t + 1, :] for t in range(KK)]

    def conv(img, w_ref):
        # im2col via XLU rolls; every tap slab is an aligned (Cp, L) store.
        for t in range(KK):
            if shifts[t] == 0:                              # centre tap
                patch_ref[t * Cp:(t + 1) * Cp, :] = img
            else:
                shifted = pltpu.roll(img, shifts[t], axis=1)
                patch_ref[t * Cp:(t + 1) * Cp, :] = shifted * masks[t]
        patches = patch_ref[...].astype(mm_dtype)
        # One MXU matmul over the whole receptive field; bias folded in.
        return jnp.dot(w_ref[...], patches, preferred_element_type=jnp.float32)

    h = jnp.maximum(conv(x_ref[0], w1_ref), 0.0)   # (Cp, L) — stays on-chip
    y = conv(h, w2_ref)                            # (Cout, L)
    o_ref[0] = y.astype(o_ref.dtype)


def _pack_weight_hwio(w_hwio, bias, cin_pad, cols, out_pad=None):
    """(K,K,Cin,Cout) HWIO + bias -> (Cout[_pad], cols) matmul matrix.

    Tap column blocks are cin_pad wide, ordered (dy, dx, ci); the bias lives in
    column K*K*cin_pad (multiplied by the ones row of the patch matrix)."""
    K = w_hwio.shape[0]
    cin, cout = w_hwio.shape[2], w_hwio.shape[3]
    wt = jnp.transpose(w_hwio, (3, 0, 1, 2)).reshape(cout, K * K, cin)
    wt = jnp.pad(wt, ((0, 0), (0, 0), (0, cin_pad - cin)))
    mat = jnp.zeros((cout, cols), jnp.float32)
    mat = mat.at[:, :K * K * cin_pad].set(wt.reshape(cout, K * K * cin_pad))
    mat = mat.at[:, K * K * cin_pad].set(bias)
    if out_pad is not None and out_pad > cout:
        mat = jnp.pad(mat, ((0, out_pad - cout), (0, 0)))
    return mat


def block_forward_pallas(x_nchw, w1_hwio, b1, w2_hwio, b2, *,
                         use_bf16=True, fold_batch=None):
    """conv1 -> ReLU -> conv2 ('same' padding, stride 1), fused in one kernel."""
    N, Cin, H, W = x_nchw.shape
    K = w1_hwio.shape[0]
    Cmid = w1_hwio.shape[-1]
    Cout = w2_hwio.shape[-1]
    assert K % 2 == 1, "even kernel_size with padding=k//2 changes spatial size"
    p = K // 2
    HW = H * W
    KK = K * K
    Cp = _round_up(max(Cin, Cmid), 8)     # aligned channel/tap stride
    cols = KK * Cp + 8                    # + bias slab

    if fold_batch is None:
        # v5e/v6e: 1 TensorCore -> fold batch into lanes (1 grid step, 2x lanes).
        # v7x / v4 / v5p: multiple TCs -> keep grid=(N,) so batch splits across cores.
        try:
            kind = jax.devices()[0].device_kind.lower()
        except Exception:
            kind = ""
        multi_tc = any(s in kind for s in ("v7", "v4", "v5p"))
        fold_batch = (N > 1) and not multi_tc

    mm_dtype = jnp.bfloat16 if use_bf16 else jnp.float32

    # Weights in matmul layout with padded channel blocks + folded bias.
    w1_mat = _pack_weight_hwio(w1_hwio, b1, Cp, cols, out_pad=Cp).astype(mm_dtype)
    w2_mat = _pack_weight_hwio(w2_hwio, b2, Cp, cols).astype(mm_dtype)

    # Channel-pad the input so every tap slab store is 8-sublane aligned.
    x_pad = jnp.pad(x_nchw.reshape(N, Cin, HW), ((0, 0), (0, Cp - Cin), (0, 0)))

    if fold_batch:
        G, L = 1, N * HW
        x_in = jnp.transpose(x_pad, (1, 0, 2)).reshape(1, Cp, L)
    else:
        G, L = N, HW
        x_in = x_pad

    # Per-tap validity masks: handle row/col zero-padding and (in the folded
    # layout) the cross-image wrap of the lane roll.
    lane = jnp.arange(L, dtype=jnp.int32)
    idx = lane % HW
    row, col = idx // W, idx % W
    masks = jnp.stack(
        [(((row + dy - p) >= 0) & ((row + dy - p) < H) &
          ((col + dx - p) >= 0) & ((col + dx - p) < W)).astype(jnp.float32)
         for dy in range(K) for dx in range(K)], axis=0)            # (KK, L)

    # Static lane-roll amounts (jnp.roll semantics: out[i] = x[(i - shift) % L]).
    shifts = tuple((-((dy - p) * W + (dx - p))) % L
                   for dy in range(K) for dx in range(K))

    flops = 2 * (Cp + Cout) * cols * L * G
    bytes_accessed = int(x_in.size * 4 + masks.size * 4 + G * Cout * L * 4
                         + (w1_mat.size + w2_mat.size) * w1_mat.dtype.itemsize)

    kernel = functools.partial(_fused_block_kernel, K=K, Cp=Cp,
                               shifts=shifts, mm_dtype=mm_dtype)
    out = pl.pallas_call(
        kernel,
        out_shape=jax.ShapeDtypeStruct((G, Cout, L), jnp.float32),
        grid=(G,),
        in_specs=[
            pl.BlockSpec((1, Cp, L), lambda n: (n, 0, 0)),
            pl.BlockSpec((Cp, cols), lambda n: (0, 0)),
            pl.BlockSpec((Cout, cols), lambda n: (0, 0)),
            pl.BlockSpec((KK, L), lambda n: (0, 0)),
        ],
        out_specs=pl.BlockSpec((1, Cout, L), lambda n: (n, 0, 0)),
        scratch_shapes=[pltpu.VMEM((cols, L), jnp.float32)],   # im2col patches
        compiler_params=pltpu.CompilerParams(
            dimension_semantics=("parallel",)),
        cost_estimate=pl.CostEstimate(flops=flops, transcendentals=0,
                                      bytes_accessed=bytes_accessed),
    )(x_in, w1_mat, w2_mat, masks)

    if fold_batch:
        out = jnp.transpose(out.reshape(Cout, N, HW), (1, 0, 2))
    return out.reshape(N, Cout, H, W)


class BlockPallas:
    """JAX/Pallas equivalent of the PyTorch `Block` module (forward path)."""

    def __init__(self, IN, OUT, split, kernel_size, key):
        self.IN, self.OUT, self.K = IN, OUT, kernel_size
        self.split = IN - split            # kept for parity; unused in forward
        self.conv_channel = split          # kept for parity; unused in forward
        k1, k2, k3, k4, k5, k6 = jax.random.split(key, 6)

        def _init_conv(kw, kb, kk, cin, cout):
            fan_in = cin * kk * kk
            bound = 1.0 / jnp.sqrt(fan_in)
            w = jax.random.uniform(kw, (kk, kk, cin, cout), jnp.float32,
                                   -bound, bound)            # HWIO
            b = jax.random.uniform(kb, (cout,), jnp.float32, -bound, bound)
            return w, b

        # body: conv1 (IN->OUT), ReLU, conv2 (OUT->OUT)
        self.w1, self.b1 = _init_conv(k1, k2, kernel_size, IN, OUT)
        self.w2, self.b2 = _init_conv(k3, k4, kernel_size, OUT, OUT)
        # skip conv (2*IN -> IN, 1x1): declared in __init__ but unused in forward.
        self.w_skip, self.b_skip = _init_conv(k5, k6, 1, 2 * IN, IN)

        self._fwd = jax.jit(block_forward_pallas)

    def __call__(self, x_nchw):
        return self._fwd(x_nchw, self.w1, self.b1, self.w2, self.b2)


def _conv_ref_nhwc(x, w, b):
    out = jax.lax.conv_general_dilated(
        x, w, window_strides=(1, 1), padding="SAME",
        dimension_numbers=("NHWC", "HWIO", "NHWC"))
    return out + b[None, None, None, :]


if __name__ == "__main__":
    key = jax.random.PRNGKey(0)
    k_in, k_par = jax.random.split(key)

    # Small shapes consistent with the module: N=2, IN=4, OUT=8, 16x16, k=3.
    N, IN, OUT, H, W, K = 2, 4, 8, 16, 16, 3
    x = jax.random.normal(k_in, (N, IN, H, W), jnp.float32)  # NCHW like PyTorch

    block = BlockPallas(IN, OUT, split=2, kernel_size=K, key=k_par)
    y = jax.block_until_ready(block(x))
    assert y.shape == (N, OUT, H, W)

    # Pure-JAX f32 reference (lax conv) for a sanity check.
    x_nhwc = jnp.transpose(x, (0, 2, 3, 1))
    h_ref = jnp.maximum(_conv_ref_nhwc(x_nhwc, block.w1, block.b1), 0.0)
    y_ref = _conv_ref_nhwc(h_ref, block.w2, block.b2)
    y_ref = jnp.transpose(y_ref, (0, 3, 1, 2))
    # bf16 MXU inputs (f32 accumulation) -> relaxed tolerance vs f32 reference.
    assert jnp.allclose(y, y_ref, atol=5e-2, rtol=5e-2), "mismatch vs lax.conv"

    print("KERNEL_OK")
</pallas_src>

<mosaic_0001>
module attributes {stable_mosaic.version = 11 : i64} {
  func.func @_fused_block_kernel(%arg0: i32, %arg1: memref<1x8x512xf32, #tpu.memory_space<vmem>>, %arg2: memref<8x80xbf16, #tpu.memory_space<vmem>>, %arg3: memref<8x80xbf16, #tpu.memory_space<vmem>>, %arg4: memref<9x512xf32, #tpu.memory_space<vmem>>, %arg5: memref<1x8x512xf32, #tpu.memory_space<vmem>>, %arg6: memref<80x512xf32, #tpu.memory_space<vmem>>) attributes {dimension_semantics = [#tpu.dimension_semantics<parallel>], iteration_bounds = array<i64: 1>, scalar_prefetch = 0 : i64, scratch_operands = 1 : i64, tpu.core_type = #tpu.core_type<tc>, window_params = [{transform_indices = @transform_0, window_bounds = array<i64: 1, 8, 512>}, {pipeline_mode = #tpu.pipeline_mode<synchronous>, transform_indices = @transform_1, window_bounds = array<i64: 8, 80>}, {pipeline_mode = #tpu.pipeline_mode<synchronous>, transform_indices = @transform_2, window_bounds = array<i64: 8, 80>}, {pipeline_mode = #tpu.pipeline_mode<synchronous>, transform_indices = @transform_3, window_bounds = array<i64: 9, 512>}, {transform_indices = @transform_4, window_bounds = array<i64: 1, 8, 512>}]} {
    %0 = tpu.iota {dimensions = array<i32: 0>} : vector<8x512xi32>
    %c0_i32 = arith.constant 0 : i32
    %1 = vector.broadcast %c0_i32 : i32 to vector<8x512xi32>
    %2 = arith.cmpi eq, %0, %1 : vector<8x512xi32>
    %3 = arith.extui %2 : vector<8x512xi1> to vector<8x512xi32>
    %4 = arith.sitofp %3 : vector<8x512xi32> to vector<8x512xf32>
    %c72 = arith.constant 72 : index
    %c0 = arith.constant 0 : index
    %5 = vector.load %arg6[%c72, %c0] : memref<80x512xf32, #tpu.memory_space<vmem>>, vector<8x512xf32>
    tpu.vector_store %arg6[%c72, %c0], %4 {strides = array<i32>} : memref<80x512xf32, #tpu.memory_space<vmem>>, vector<8x512xf32>,
    %c0_0 = arith.constant 0 : index
    %c0_1 = arith.constant 0 : index
    %6 = vector.load %arg4[%c0_0, %c0_1] : memref<9x512xf32, #tpu.memory_space<vmem>>, vector<1x512xf32>
    %c1 = arith.constant 1 : index
    %c0_2 = arith.constant 0 : index
    %7 = vector.load %arg4[%c1, %c0_2] : memref<9x512xf32, #tpu.memory_space<vmem>>, vector<1x512xf32>
    %c2 = arith.constant 2 : index
    %c0_3 = arith.constant 0 : index
    %8 = vector.load %arg4[%c2, %c0_3] : memref<9x512xf32, #tpu.memory_space<vmem>>, vector<1x512xf32>
    %c3 = arith.constant 3 : index
    %c0_4 = arith.constant 0 : index
    %9 = vector.load %arg4[%c3, %c0_4] : memref<9x512xf32, #tpu.memory_space<vmem>>, vector<1x512xf32>
    %c5 = arith.constant 5 : index
    %c0_5 = arith.constant 0 : index
    %10 = vector.load %arg4[%c5, %c0_5] : memref<9x512xf32, #tpu.memory_space<vmem>>, vector<1x512xf32>
    %c6 = arith.constant 6 : index
    %c0_6 = arith.constant 0 : index
    %11 = vector.load %arg4[%c6, %c0_6] : memref<9x512xf32, #tpu.memory_space<vmem>>, vector<1x512xf32>
    %c7 = arith.constant 7 : index
    %c0_7 = arith.constant 0 : index
    %12 = vector.load %arg4[%c7, %c0_7] : memref<9x512xf32, #tpu.memory_space<vmem>>, vector<1x512xf32>
    %c8 = arith.constant 8 : index
    %c0_8 = arith.constant 0 : index
    %13 = vector.load %arg4[%c8, %c0_8] : memref<9x512xf32, #tpu.memory_space<vmem>>, vector<1x512xf32>
    %c0_9 = arith.constant 0 : index
    %c0_10 = arith.constant 0 : index
    %c0_11 = arith.constant 0 : index
    %14 = vector.load %arg1[%c0_9, %c0_10, %c0_11] : memref<1x8x512xf32, #tpu.memory_space<vmem>>, vector<1x8x512xf32>
    %15 = vector.shape_cast %14 : vector<1x8x512xf32> to vector<8x512xf32>
    %c17_i32 = arith.constant 17 : i32
    %16 = tpu.dynamic_rotate %15 by %c17_i32 dim 1 : vector<8x512xf32>, i32 -> vector<8x512xf32>
    %17 = vector.broadcast %6 : vector<1x512xf32> to vector<8x512xf32>
    %18 = arith.mulf %16, %17 : vector<8x512xf32>
    %c0_12 = arith.constant 0 : index
    %c0_13 = arith.constant 0 : index
    %19 = vector.load %arg6[%c0_12, %c0_13] : memref<80x512xf32, #tpu.memory_space<vmem>>, vector<8x512xf32>
    tpu.vector_store %arg6[%c0_12, %c0_13], %18 {strides = array<i32>} : memref<80x512xf32, #tpu.memory_space<vmem>>, vector<8x512xf32>,
    %c16_i32 = arith.constant 16 : i32
    %20 = tpu.dynamic_rotate %15 by %c16_i32 dim 1 : vector<8x512xf32>, i32 -> vector<8x512xf32>
    %21 = vector.broadcast %7 : vector<1x512xf32> to vector<8x512xf32>
    %22 = arith.mulf %20, %21 : vector<8x512xf32>
    %c8_14 = arith.constant 8 : index
    %c0_15 = arith.constant 0 : index
    %23 = vector.load %arg6[%c8_14, %c0_15] : memref<80x512xf32, #tpu.memory_space<vmem>>, vector<8x512xf32>
    tpu.vector_store %arg6[%c8_14, %c0_15], %22 {strides = array<i32>} : memref<80x512xf32, #tpu.memory_space<vmem>>, vector<8x512xf32>,
    %c15_i32 = arith.constant 15 : i32
    %24 = tpu.dynamic_rotate %15 by %c15_i32 dim 1 : vector<8x512xf32>, i32 -> vector<8x512xf32>
    %25 = vector.broadcast %8 : vector<1x512xf32> to vector<8x512xf32>
    %26 = arith.mulf %24, %25 : vector<8x512xf32>
    %c16 = arith.constant 16 : index
    %c0_16 = arith.constant 0 : index
    %27 = vector.load %arg6[%c16, %c0_16] : memref<80x512xf32, #tpu.memory_space<vmem>>, vector<8x512xf32>
    tpu.vector_store %arg6[%c16, %c0_16], %26 {strides = array<i32>} : memref<80x512xf32, #tpu.memory_space<vmem>>, vector<8x512xf32>,
    %c1_i32 = arith.constant 1 : i32
    %28 = tpu.dynamic_rotate %15 by %c1_i32 dim 1 : vector<8x512xf32>, i32 -> vector<8x512xf32>
    %29 = vector.broadcast %9 : vector<1x512xf32> to vector<8x512xf32>
    %30 = arith.mulf %28, %29 : vector<8x512xf32>
    %c24 = arith.constant 24 : index
    %c0_17 = arith.constant 0 : index
    %31 = vector.load %arg6[%c24, %c0_17] : memref<80x512xf32, #tpu.memory_space<vmem>>, vector<8x512xf32>
    tpu.vector_store %arg6[%c24, %c0_17], %30 {strides = array<i32>} : memref<80x512xf32, #tpu.memory_space<vmem>>, vector<8x512xf32>,
    %c32 = arith.constant 32 : index
    %c0_18 = arith.constant 0 : index
    %32 = vector.load %arg6[%c32, %c0_18] : memref<80x512xf32, #tpu.memory_space<vmem>>, vector<8x512xf32>
    tpu.vector_store %arg6[%c32, %c0_18], %15 {strides = array<i32>} : memref<80x512xf32, #tpu.memory_space<vmem>>, vector<8x512xf32>,
    %c511_i32 = arith.constant 511 : i32
    %33 = tpu.dynamic_rotate %15 by %c511_i32 dim 1 : vector<8x512xf32>, i32 -> vector<8x512xf32>
    %34 = vector.broadcast %10 : vector<1x512xf32> to vector<8x512xf32>
    %35 = arith.mulf %33, %34 : vector<8x512xf32>
    %c40 = arith.constant 40 : index
    %c0_19 = arith.constant 0 : index
    %36 = vector.load %arg6[%c40, %c0_19] : memref<80x512xf32, #tpu.memory_space<vmem>>, vector<8x512xf32>
    tpu.vector_store %arg6[%c40, %c0_19], %35 {strides = array<i32>} : memref<80x512xf32, #tpu.memory_space<vmem>>, vector<8x512xf32>,
    %c497_i32 = arith.constant 497 : i32
    %37 = tpu.dynamic_rotate %15 by %c497_i32 dim 1 : vector<8x512xf32>, i32 -> vector<8x512xf32>
    %38 = vector.broadcast %11 : vector<1x512xf32> to vector<8x512xf32>
    %39 = arith.mulf %37, %38 : vector<8x512xf32>
    %c48 = arith.constant 48 : index
    %c0_20 = arith.constant 0 : index
    %40 = vector.load %arg6[%c48, %c0_20] : memref<80x512xf32, #tpu.memory_space<vmem>>, vector<8x512xf32>
    tpu.vector_store %arg6[%c48, %c0_20], %39 {strides = array<i32>} : memref<80x512xf32, #tpu.memory_space<vmem>>, vector<8x512xf32>,
    %c496_i32 = arith.constant 496 : i32
    %41 = tpu.dynamic_rotate %15 by %c496_i32 dim 1 : vector<8x512xf32>, i32 -> vector<8x512xf32>
    %42 = vector.broadcast %12 : vector<1x512xf32> to vector<8x512xf32>
    %43 = arith.mulf %41, %42 : vector<8x512xf32>
    %c56 = arith.constant 56 : index
    %c0_21 = arith.constant 0 : index
    %44 = vector.load %arg6[%c56, %c0_21] : memref<80x512xf32, #tpu.memory_space<vmem>>, vector<8x512xf32>
    tpu.vector_store %arg6[%c56, %c0_21], %43 {strides = array<i32>} : memref<80x512xf32, #tpu.memory_space<vmem>>, vector<8x512xf32>,
    %c495_i32 = arith.constant 495 : i32
    %45 = tpu.dynamic_rotate %15 by %c495_i32 dim 1 : vector<8x512xf32>, i32 -> vector<8x512xf32>
    %46 = vector.broadcast %13 : vector<1x512xf32> to vector<8x512xf32>
    %47 = arith.mulf %45, %46 : vector<8x512xf32>
    %c64 = arith.constant 64 : index
    %c0_22 = arith.constant 0 : index
    %48 = vector.load %arg6[%c64, %c0_22] : memref<80x512xf32, #tpu.memory_space<vmem>>, vector<8x512xf32>
    tpu.vector_store %arg6[%c64, %c0_22], %47 {strides = array<i32>} : memref<80x512xf32, #tpu.memory_space<vmem>>, vector<8x512xf32>,
    %c0_23 = arith.constant 0 : index
    %c0_24 = arith.constant 0 : index
    %49 = vector.load %arg6[%c0_23, %c0_24] : memref<80x512xf32, #tpu.memory_space<vmem>>, vector<80x512xf32>
    %50 = arith.truncf %49 : vector<80x512xf32> to vector<80x512xbf16>
    %c0_25 = arith.constant 0 : index
    %c0_26 = arith.constant 0 : index
    %51 = vector.load %arg2[%c0_25, %c0_26] : memref<8x80xbf16, #tpu.memory_space<vmem>>, vector<8x80xbf16>
    %cst = arith.constant dense<0.000000e+00> : vector<8x512xf32>
    %52 = tpu.matmul %51, %50, %cst {dimension_numbers = #tpu.dot_dimension_numbers<[1], [0], [0], [1], [0, 0, 1, 1], [], []>} : vector<8x80xbf16>, vector<80x512xbf16>, vector<8x512xf32> -> vector<8x512xf32>
    %cst_27 = arith.constant 0.000000e+00 : f32
    %53 = vector.broadcast %cst_27 : f32 to vector<8x512xf32>
    %54 = arith.maximumf %52, %53 : vector<8x512xf32>
    %c17_i32_28 = arith.constant 17 : i32
    %55 = tpu.dynamic_rotate %54 by %c17_i32_28 dim 1 : vector<8x512xf32>, i32 -> vector<8x512xf32>
    %56 = vector.broadcast %6 : vector<1x512xf32> to vector<8x512xf32>
    %57 = arith.mulf %55, %56 : vector<8x512xf32>
    %c0_29 = arith.constant 0 : index
    %c0_30 = arith.constant 0 : index
    %58 = vector.load %arg6[%c0_29, %c0_30] : memref<80x512xf32, #tpu.memory_space<vmem>>, vector<8x512xf32>
    tpu.vector_store %arg6[%c0_29, %c0_30], %57 {strides = array<i32>} : memref<80x512xf32, #tpu.memory_space<vmem>>, vector<8x512xf32>,
    %c16_i32_31 = arith.constant 16 : i32
    %59 = tpu.dynamic_rotate %54 by %c16_i32_31 dim 1 : vector<8x512xf32>, i32 -> vector<8x512xf32>
    %60 = vector.broadcast %7 : vector<1x512xf32> to vector<8x512xf32>
    %61 = arith.mulf %59, %60 : vector<8x512xf32>
    %c8_32 = arith.constant 8 : index
    %c0_33 = arith.constant 0 : index
    %62 = vector.load %arg6[%c8_32, %c0_33] : memref<80x512xf32, #tpu.memory_space<vmem>>, vector<8x512xf32>
    tpu.vector_store %arg6[%c8_32, %c0_33], %61 {strides = array<i32>} : memref<80x512xf32, #tpu.memory_space<vmem>>, vector<8x512xf32>,
    %c15_i32_34 = arith.constant 15 : i32
    %63 = tpu.dynamic_rotate %54 by %c15_i32_34 dim 1 : vector<8x512xf32>, i32 -> vector<8x512xf32>
    %64 = vector.broadcast %8 : vector<1x512xf32> to vector<8x512xf32>
    %65 = arith.mulf %63, %64 : vector<8x512xf32>
    %c16_35 = arith.constant 16 : index
    %c0_36 = arith.constant 0 : index
    %66 = vector.load %arg6[%c16_35, %c0_36] : memref<80x512xf32, #tpu.memory_space<vmem>>, vector<8x512xf32>
    tpu.vector_store %arg6[%c16_35, %c0_36], %65 {strides = array<i32>} : memref<80x512xf32, #tpu.memory_space<vmem>>, vector<8x512xf32>,
    %c1_i32_37 = arith.constant 1 : i32
    %67 = tpu.dynamic_rotate %54 by %c1_i32_37 dim 1 : vector<8x512xf32>, i32 -> vector<8x512xf32>
    %68 = vector.broadcast %9 : vector<1x512xf32> to vector<8x512xf32>
    %69 = arith.mulf %67, %68 : vector<8x512xf32>
    %c24_38 = arith.constant 24 : index
    %c0_39 = arith.constant 0 : index
    %70 = vector.load %arg6[%c24_38, %c0_39] : memref<80x512xf32, #tpu.memory_space<vmem>>, vector<8x512xf32>
    tpu.vector_store %arg6[%c24_38, %c0_39], %69 {strides = array<i32>} : memref<80x512xf32, #tpu.memory_space<vmem>>, vector<8x512xf32>,
    %c32_40 = arith.constant 32 : index
    %c0_41 = arith.constant 0 : index
    %71 = vector.load %arg6[%c32_40, %c0_41] : memref<80x512xf32, #tpu.memory_space<vmem>>, vector<8x512xf32>
    tpu.vector_store %arg6[%c32_40, %c0_41], %54 {strides = array<i32>} : memref<80x512xf32, #tpu.memory_space<vmem>>, vector<8x512xf32>,
    %c511_i32_42 = arith.constant 511 : i32
    %72 = tpu.dynamic_rotate %54 by %c511_i32_42 dim 1 : vector<8x512xf32>, i32 -> vector<8x512xf32>
    %73 = vector.broadcast %10 : vector<1x512xf32> to vector<8x512xf32>
    %74 = arith.mulf %72, %73 : vector<8x512xf32>
    %c40_43 = arith.constant 40 : index
    %c0_44 = arith.constant 0 : index
    %75 = vector.load %arg6[%c40_43, %c0_44] : memref<80x512xf32, #tpu.memory_space<vmem>>, vector<8x512xf32>
    tpu.vector_store %arg6[%c40_43, %c0_44], %74 {strides = array<i32>} : memref<80x512xf32, #tpu.memory_space<vmem>>, vector<8x512xf32>,
    %c497_i32_45 = arith.constant 497 : i32
    %76 = tpu.dynamic_rotate %54 by %c497_i32_45 dim 1 : vector<8x512xf32>, i32 -> vector<8x512xf32>
    %77 = vector.broadcast %11 : vector<1x512xf32> to vector<8x512xf32>
    %78 = arith.mulf %76, %77 : vector<8x512xf32>
    %c48_46 = arith.constant 48 : index
    %c0_47 = arith.constant 0 : index
    %79 = vector.load %arg6[%c48_46, %c0_47] : memref<80x512xf32, #tpu.memory_space<vmem>>, vector<8x512xf32>
    tpu.vector_store %arg6[%c48_46, %c0_47], %78 {strides = array<i32>} : memref<80x512xf32, #tpu.memory_space<vmem>>, vector<8x512xf32>,
    %c496_i32_48 = arith.constant 496 : i32
    %80 = tpu.dynamic_rotate %54 by %c496_i32_48 dim 1 : vector<8x512xf32>, i32 -> vector<8x512xf32>
    %81 = vector.broadcast %12 : vector<1x512xf32> to vector<8x512xf32>
    %82 = arith.mulf %80, %81 : vector<8x512xf32>
    %c56_49 = arith.constant 56 : index
    %c0_50 = arith.constant 0 : index
    %83 = vector.load %arg6[%c56_49, %c0_50] : memref<80x512xf32, #tpu.memory_space<vmem>>, vector<8x512xf32>
    tpu.vector_store %arg6[%c56_49, %c0_50], %82 {strides = array<i32>} : memref<80x512xf32, #tpu.memory_space<vmem>>, vector<8x512xf32>,
    %c495_i32_51 = arith.constant 495 : i32
    %84 = tpu.dynamic_rotate %54 by %c495_i32_51 dim 1 : vector<8x512xf32>, i32 -> vector<8x512xf32>
    %85 = vector.broadcast %13 : vector<1x512xf32> to vector<8x512xf32>
    %86 = arith.mulf %84, %85 : vector<8x512xf32>
    %c64_52 = arith.constant 64 : index
    %c0_53 = arith.constant 0 : index
    %87 = vector.load %arg6[%c64_52, %c0_53] : memref<80x512xf32, #tpu.memory_space<vmem>>, vector<8x512xf32>
    tpu.vector_store %arg6[%c64_52, %c0_53], %86 {strides = array<i32>} : memref<80x512xf32, #tpu.memory_space<vmem>>, vector<8x512xf32>,
    %c0_54 = arith.constant 0 : index
    %c0_55 = arith.constant 0 : index
    %88 = vector.load %arg6[%c0_54, %c0_55] : memref<80x512xf32, #tpu.memory_space<vmem>>, vector<80x512xf32>
    %89 = arith.truncf %88 : vector<80x512xf32> to vector<80x512xbf16>
    %c0_56 = arith.constant 0 : index
    %c0_57 = arith.constant 0 : index
    %90 = vector.load %arg3[%c0_56, %c0_57] : memref<8x80xbf16, #tpu.memory_space<vmem>>, vector<8x80xbf16>
    %cst_58 = arith.constant dense<0.000000e+00> : vector<8x512xf32>
    %91 = tpu.matmul %90, %89, %cst_58 {dimension_numbers = #tpu.dot_dimension_numbers<[1], [0], [0], [1], [0, 0, 1, 1], [], []>} : vector<8x80xbf16>, vector<80x512xbf16>, vector<8x512xf32> -> vector<8x512xf32>
    %c0_59 = arith.constant 0 : index
    %c0_60 = arith.constant 0 : index
    %c0_61 = arith.constant 0 : index
    %92 = vector.load %arg5[%c0_59, %c0_60, %c0_61] : memref<1x8x512xf32, #tpu.memory_space<vmem>>, vector<1x8x512xf32>
    %93 = vector.shape_cast %92 : vector<1x8x512xf32> to vector<8x512xf32>
    %94 = vector.shape_cast %91 : vector<8x512xf32> to vector<1x8x512xf32>
    tpu.vector_store %arg5[%c0_59, %c0_60, %c0_61], %94 {strides = array<i32>} : memref<1x8x512xf32, #tpu.memory_space<vmem>>, vector<1x8x512xf32>,
    return
  }
  func.func @transform_0(%arg0: i32) -> (i32, i32, i32) {
    %c0_i32 = arith.constant 0 : i32
    %c0_i32_0 = arith.constant 0 : i32
    %c0_i32_1 = arith.constant 0 : i32
    return %arg0, %c0_i32, %c0_i32_0 : i32, i32, i32
  }
  func.func @transform_1(%arg0: i32) -> (i32, i32) {
    %c0_i32 = arith.constant 0 : i32
    %c0_i32_0 = arith.constant 0 : i32
    %c0_i32_1 = arith.constant 0 : i32
    return %c0_i32, %c0_i32_0 : i32, i32
  }
  func.func @transform_2(%arg0: i32) -> (i32, i32) {
    %c0_i32 = arith.constant 0 : i32
    %c0_i32_0 = arith.constant 0 : i32
    %c0_i32_1 = arith.constant 0 : i32
    return %c0_i32, %c0_i32_0 : i32, i32
  }
  func.func @transform_3(%arg0: i32) -> (i32, i32) {
    %c0_i32 = arith.constant 0 : i32
    %c0_i32_0 = arith.constant 0 : i32
    %c0_i32_1 = arith.constant 0 : i32
    return %c0_i32, %c0_i32_0 : i32, i32
  }
  func.func @transform_4(%arg0: i32) -> (i32, i32, i32) {
    %c0_i32 = arith.constant 0 : i32
    %c0_i32_0 = arith.constant 0 : i32
    %c0_i32_1 = arith.constant 0 : i32
    return %arg0, %c0_i32, %c0_i32_0 : i32, i32, i32
  }
}

</mosaic_0001>

<llo_original>
// kernel: block_forward_pallas.1
$region0: #{block_forward_pallas.1}
  #allocation0 [shape = 'u32[]', space=smem, size = 0x4, offset = 0x4, fixed_abs, tag = 'smem constant byte address 0x4 - core index']
  #allocation1 [shape = 'u32[144,128]{1,0:T(1,128)}', space=vmem, size = 0x12000, scoped, tag = 'internal scratch']
  #allocation2 [shape = 'f32[80,512]{1,0:T(8,128)}', space=vmem, size = 0x28000, scoped, tag = 'scratch operand']
  %s0 = inlined_call_operand.vmem [shape: f32[1,8,512], index: 0, kind: input, shape index: {}]
  %s1 = inlined_call_operand.vmem [shape: bf16[8,80], index: 1, kind: input, shape index: {}]
  %s2 = inlined_call_operand.vmem [shape: bf16[8,80], index: 2, kind: input, shape index: {}]
  %s3 = inlined_call_operand.vmem [shape: f32[9,512], index: 3, kind: input, shape index: {}]
  %s4 = inlined_call_operand.vmem [shape: f32[1,8,512], index: 4, kind: output, shape index: {}]
  %s5 = sld [smem:[#allocation0]]
  $region26: #{block_forward_pallas.1} parent=0
    _
  %s7 = ssub.s32 1, %s5
  %s8 = scalar_select 0, %s7, %s5
  // Predicated region
  $region2: #{block_forward_pallas.1} parent=0 // pred_check
    _
  $region3: #{block_forward_pallas.1} parent=0 // pred_check_branch
    %10 = sbr.rel (0) target = $region5
  $region4: #{block_forward_pallas.1} parent=0 // pred_region
    _
  $region5: #{block_forward_pallas.1} parent=0 // pred_fallthru
    _
  // Predicated region
  $region6: #{block_forward_pallas.1} parent=0 // pred_check
    _
  $region7: #{block_forward_pallas.1} parent=0 // pred_check_branch
    %12 = sbr.rel (0) target = $region9
  $region8: #{block_forward_pallas.1} parent=0 // pred_region
    _
  $region9: #{block_forward_pallas.1} parent=0 // pred_fallthru
    _
  // Predicated region
  $region10: #{block_forward_pallas.1} parent=0 // pred_check
    _
  $region11: #{block_forward_pallas.1} parent=0 // pred_check_branch
    %14 = sbr.rel (0) target = $region13
  $region12: #{block_forward_pallas.1} parent=0 // pred_region
    _
  $region13: #{block_forward_pallas.1} parent=0 // pred_fallthru
    _
  // Predicated region
  $region14: #{block_forward_pallas.1} parent=0 // pred_check
    _
  $region15: #{block_forward_pallas.1} parent=0 // pred_check_branch
    %16 = sbr.rel (0) target = $region17
  $region16: #{block_forward_pallas.1} parent=0 // pred_region
    _
  $region17: #{block_forward_pallas.1} parent=0 // pred_fallthru
    _
  %v18 = vlaneseq
  %v19 = vshrl.u32 %v18, 7
  %vm20 = vcmp.eq.s32.totalorder %v19, 0
  %v21 = vsel %vm20, 1, 0
  %v22 = vcvt.s32.f32 %v21
  %23 = vst [vmem:[#allocation2 + $0x120] sm:$0xff] %v22
  %24 = vst [vmem:[#allocation2 + $0x128] sm:$0xff] %v22
  %25 = vst [vmem:[#allocation2 + $0x130] sm:$0xff] %v22
  %26 = vst [vmem:[#allocation2 + $0x138] sm:$0xff] %v22
  %v27 = vld [vmem:[%s3] ss:$8 sm:$0xf]
  %s28 = scalar_lea.vmem %s3, 1
  %v29 = vld [vmem:[%s28] ss:$8 sm:$0xf]
  %s30 = scalar_lea.vmem %s3, 2
  %v31 = vld [vmem:[%s30] ss:$8 sm:$0xf]
  %s32 = scalar_lea.vmem %s3, 3
  %v33 = vld [vmem:[%s32] ss:$8 sm:$0xf]
  %s34 = scalar_lea.vmem %s3, 5
  %v35 = vld [vmem:[%s34] ss:$8 sm:$0xf]
  %s36 = scalar_lea.vmem %s3, 6
  %v37 = vld [vmem:[%s36] ss:$8 sm:$0xf]
  %s38 = scalar_lea.vmem %s3, 7
  %v39 = vld [vmem:[%s38] ss:$8 sm:$0xf]
  %s40 = scalar_lea.vmem %s3, 32
  %v41 = vld [vmem:[%s40] ss:$8 sm:$0xf]
  %v42 = vld [vmem:[%s0] sm:$0xff]
  %v43 = vld [vmem:[%s0 + $0x8] sm:$0xff]
  %v44 = vld [vmem:[%s0 + $0x10] sm:$0xff]
  %v45 = vld [vmem:[%s0 + $0x18] sm:$0xff]
  %46 = vrot.lane.b32.xlu0 %v42, 17
  %v47 = vpop.permute.xlu0 %46
  %48 = vrot.lane.b32.xlu0 %v43, 17
  %v49 = vpop.permute.xlu0 %48
  %50 = vrot.lane.b32.xlu0 %v44, 17
  %v51 = vpop.permute.xlu0 %50
  %52 = vrot.lane.b32.xlu0 %v45, 17
  %v53 = vpop.permute.xlu0 %52
  %v54 = vlaneseq
  %v55 = vand.u32 %v54, 127
  %vm56 = vcmp.lt.s32.totalorder %v55, 17
  %v57 = vsel %vm56, %v51, %v53
  %v58 = vsel %vm56, %v49, %v51
  %v59 = vsel %vm56, %v47, %v49
  %v60 = vsel %vm56, %v53, %v47
  %v62 = vlaneseq
  %v63 = vshrl.u32 %v62, 7
  %v64 = vsub.s32 0, %v63
  %v65 = vrot.slane %v27, %v64
  %v66 = vlaneseq
  %v67 = vshrl.u32 %v66, 7
  %v68 = vsub.s32 1, %v67
  %v69 = vrot.slane %v27, %v68
  %v70 = vlaneseq
  %v71 = vshrl.u32 %v70, 7
  %v72 = vsub.s32 2, %v71
  %v73 = vrot.slane %v27, %v72
  %v74 = vlaneseq
  %v75 = vshrl.u32 %v74, 7
  %v76 = vsub.s32 3, %v75
  %v77 = vrot.slane %v27, %v76
  %v82 = vmul.f32 %v60, %v65
  %v83 = vmul.f32 %v59, %v69
  %v84 = vmul.f32 %v58, %v73
  %v85 = vmul.f32 %v57, %v77
  %86 = vst [vmem:[#allocation2] sm:$0xff] %v82
  %87 = vst [vmem:[#allocation2 + $0x8] sm:$0xff] %v83
  %88 = vst [vmem:[#allocation2 + $0x10] sm:$0xff] %v84
  %89 = vst [vmem:[#allocation2 + $0x18] sm:$0xff] %v85
  %90 = vrot.lane.b32.xlu0 %v42, 16
  %v91 = vpop.permute.xlu0 %90
  %92 = vrot.lane.b32.xlu0 %v43, 16
  %v93 = vpop.permute.xlu0 %92
  %94 = vrot.lane.b32.xlu0 %v44, 16
  %v95 = vpop.permute.xlu0 %94
  %96 = vrot.lane.b32.xlu0 %v45, 16
  %v97 = vpop.permute.xlu0 %96
  %vm98 = vcmp.lt.s32.totalorder %v55, 16
  %v99 = vsel %vm98, %v95, %v97
  %v100 = vsel %vm98, %v93, %v95
  %v101 = vsel %vm98, %v91, %v93
  %v102 = vsel %vm98, %v97, %v91
  %v104 = vlaneseq
  %v105 = vshrl.u32 %v104, 7
  %v106 = vsub.s32 0, %v105
  %v107 = vrot.slane %v29, %v106
  %v108 = vlaneseq
  %v109 = vshrl.u32 %v108, 7
  %v110 = vsub.s32 1, %v109
  %v111 = vrot.slane %v29, %v110
  %v112 = vlaneseq
  %v113 = vshrl.u32 %v112, 7
  %v114 = vsub.s32 2, %v113
  %v115 = vrot.slane %v29, %v114
  %v116 = vlaneseq
  %v117 = vshrl.u32 %v116, 7
  %v118 = vsub.s32 3, %v117
  %v119 = vrot.slane %v29, %v118
  %v124 = vmul.f32 %v102, %v107
  %v125 = vmul.f32 %v101, %v111
  %v126 = vmul.f32 %v100, %v115
  %v127 = vmul.f32 %v99, %v119
  %128 = vst [vmem:[#allocation2 + $0x20] sm:$0xff] %v124
  %129 = vst [vmem:[#allocation2 + $0x28] sm:$0xff] %v125
  %130 = vst [vmem:[#allocation2 + $0x30] sm:$0xff] %v126
  %131 = vst [vmem:[#allocation2 + $0x38] sm:$0xff] %v127
  %132 = vrot.lane.b32.xlu0 %v42, 15
  %v133 = vpop.permute.xlu0 %132
  %134 = vrot.lane.b32.xlu0 %v43, 15
  %v135 = vpop.permute.xlu0 %134
  %136 = vrot.lane.b32.xlu0 %v44, 15
  %v137 = vpop.permute.xlu0 %136
  %138 = vrot.lane.b32.xlu0 %v45, 15
  %v139 = vpop.permute.xlu0 %138
  %vm140 = vcmp.lt.s32.totalorder %v55, 15
  %v141 = vsel %vm140, %v137, %v139
  %v142 = vsel %vm140, %v135, %v137
  %v143 = vsel %vm140, %v133, %v135
  %v144 = vsel %vm140, %v139, %v133
  %v146 = vlaneseq
  %v147 = vshrl.u32 %v146, 7
  %v148 = vsub.s32 0, %v147
  %v149 = vrot.slane %v31, %v148
  %v150 = vlaneseq
  %v151 = vshrl.u32 %v150, 7
  %v152 = vsub.s32 1, %v151
  %v153 = vrot.slane %v31, %v152
  %v154 = vlaneseq
  %v155 = vshrl.u32 %v154, 7
  %v156 = vsub.s32 2, %v155
  %v157 = vrot.slane %v31, %v156
  %v158 = vlaneseq
  %v159 = vshrl.u32 %v158, 7
  %v160 = vsub.s32 3, %v159
  %v161 = vrot.slane %v31, %v160
  %v166 = vmul.f32 %v144, %v149
  %v167 = vmul.f32 %v143, %v153
  %v168 = vmul.f32 %v142, %v157
  %v169 = vmul.f32 %v141, %v161
  %170 = vst [vmem:[#allocation2 + $0x40] sm:$0xff] %v166
  %171 = vst [vmem:[#allocation2 + $0x48] sm:$0xff] %v167
  %172 = vst [vmem:[#allocation2 + $0x50] sm:$0xff] %v168
  %173 = vst [vmem:[#allocation2 + $0x58] sm:$0xff] %v169
  %174 = vrot.lane.b32.xlu0 %v42, 1
  %v175 = vpop.permute.xlu0 %174
  %176 = vrot.lane.b32.xlu0 %v43, 1
  %v177 = vpop.permute.xlu0 %176
  %178 = vrot.lane.b32.xlu0 %v44, 1
  %v179 = vpop.permute.xlu0 %178
  %180 = vrot.lane.b32.xlu0 %v45, 1
  %v181 = vpop.permute.xlu0 %180
  %vm182 = vcmp.lt.s32.totalorder %v55, 1
  %v183 = vsel %vm182, %v179, %v181
  %v184 = vsel %vm182, %v177, %v179
  %v185 = vsel %vm182, %v175, %v177
  %v186 = vsel %vm182, %v181, %v175
  %v188 = vlaneseq
  %v189 = vshrl.u32 %v188, 7
  %v190 = vsub.s32 0, %v189
  %v191 = vrot.slane %v33, %v190
  %v192 = vlaneseq
  %v193 = vshrl.u32 %v192, 7
  %v194 = vsub.s32 1, %v193
  %v195 = vrot.slane %v33, %v194
  %v196 = vlaneseq
  %v197 = vshrl.u32 %v196, 7
  %v198 = vsub.s32 2, %v197
  %v199 = vrot.slane %v33, %v198
  %v200 = vlaneseq
  %v201 = vshrl.u32 %v200, 7
  %v202 = vsub.s32 3, %v201
  %v203 = vrot.slane %v33, %v202
  %v208 = vmul.f32 %v186, %v191
  %v209 = vmul.f32 %v185, %v195
  %v210 = vmul.f32 %v184, %v199
  %v211 = vmul.f32 %v183, %v203
  %212 = vst [vmem:[#allocation2 + $0x60] sm:$0xff] %v208
  %213 = vst [vmem:[#allocation2 + $0x68] sm:$0xff] %v209
  %214 = vst [vmem:[#allocation2 + $0x70] sm:$0xff] %v210
  %215 = vst [vmem:[#allocation2 + $0x78] sm:$0xff] %v211
  %216 = vst [vmem:[#allocation2 + $0x80] sm:$0xff] %v42
  %217 = vst [vmem:[#allocation2 + $0x88] sm:$0xff] %v43
  %218 = vst [vmem:[#allocation2 + $0x90] sm:$0xff] %v44
  %219 = vst [vmem:[#allocation2 + $0x98] sm:$0xff] %v45
  %220 = vrot.lane.b32.xlu0 %v42, 127
  %v221 = vpop.permute.xlu0 %220
  %222 = vrot.lane.b32.xlu0 %v43, 127
  %v223 = vpop.permute.xlu0 %222
  %224 = vrot.lane.b32.xlu0 %v44, 127
  %v225 = vpop.permute.xlu0 %224
  %226 = vrot.lane.b32.xlu0 %v45, 127
  %v227 = vpop.permute.xlu0 %226
  %vm228 = vcmp.lt.s32.totalorder %v55, 127
  %v229 = vsel %vm228, %v225, %v227
  %v230 = vsel %vm228, %v223, %v225
  %v231 = vsel %vm228, %v221, %v223
  %v232 = vsel %vm228, %v227, %v221
  %v234 = vlaneseq
  %v235 = vshrl.u32 %v234, 7
  %v236 = vsub.s32 0, %v235
  %v237 = vrot.slane %v35, %v236
  %v238 = vlaneseq
  %v239 = vshrl.u32 %v238, 7
  %v240 = vsub.s32 1, %v239
  %v241 = vrot.slane %v35, %v240
  %v242 = vlaneseq
  %v243 = vshrl.u32 %v242, 7
  %v244 = vsub.s32 2, %v243
  %v245 = vrot.slane %v35, %v244
  %v246 = vlaneseq
  %v247 = vshrl.u32 %v246, 7
  %v248 = vsub.s32 3, %v247
  %v249 = vrot.slane %v35, %v248
  %v254 = vmul.f32 %v231, %v237
  %v255 = vmul.f32 %v230, %v241
  %v256 = vmul.f32 %v229, %v245
  %v257 = vmul.f32 %v232, %v249
  %258 = vst [vmem:[#allocation2 + $0xa0] sm:$0xff] %v254
  %259 = vst [vmem:[#allocation2 + $0xa8] sm:$0xff] %v255
  %260 = vst [vmem:[#allocation2 + $0xb0] sm:$0xff] %v256
  %261 = vst [vmem:[#allocation2 + $0xb8] sm:$0xff] %v257
  %262 = vrot.lane.b32.xlu0 %v42, 113
  %v263 = vpop.permute.xlu0 %262
  %264 = vrot.lane.b32.xlu0 %v43, 113
  %v265 = vpop.permute.xlu0 %264
  %266 = vrot.lane.b32.xlu0 %v44, 113
  %v267 = vpop.permute.xlu0 %266
  %268 = vrot.lane.b32.xlu0 %v45, 113
  %v269 = vpop.permute.xlu0 %268
  %vm270 = vcmp.lt.s32.totalorder %v55, 113
  %v271 = vsel %vm270, %v267, %v269
  %v272 = vsel %vm270, %v265, %v267
  %v273 = vsel %vm270, %v263, %v265
  %v274 = vsel %vm270, %v269, %v263
  %v276 = vlaneseq
  %v277 = vshrl.u32 %v276, 7
  %v278 = vsub.s32 0, %v277
  %v279 = vrot.slane %v37, %v278
  %v280 = vlaneseq
  %v281 = vshrl.u32 %v280, 7
  %v282 = vsub.s32 1, %v281
  %v283 = vrot.slane %v37, %v282
  %v284 = vlaneseq
  %v285 = vshrl.u32 %v284, 7
  %v286 = vsub.s32 2, %v285
  %v287 = vrot.slane %v37, %v286
  %v288 = vlaneseq
  %v289 = vshrl.u32 %v288, 7
  %v290 = vsub.s32 3, %v289
  %v291 = vrot.slane %v37, %v290
  %v296 = vmul.f32 %v273, %v279
  %v297 = vmul.f32 %v272, %v283
  %v298 = vmul.f32 %v271, %v287
  %v299 = vmul.f32 %v274, %v291
  %300 = vst [vmem:[#allocation2 + $0xc0] sm:$0xff] %v296
  %301 = vst [vmem:[#allocation2 + $0xc8] sm:$0xff] %v297
  %302 = vst [vmem:[#allocation2 + $0xd0] sm:$0xff] %v298
  %303 = vst [vmem:[#allocation2 + $0xd8] sm:$0xff] %v299
  %304 = vrot.lane.b32.xlu0 %v42, 112
  %v305 = vpop.permute.xlu0 %304
  %306 = vrot.lane.b32.xlu0 %v43, 112
  %v307 = vpop.permute.xlu0 %306
  %308 = vrot.lane.b32.xlu0 %v44, 112
  %v309 = vpop.permute.xlu0 %308
  %310 = vrot.lane.b32.xlu0 %v45, 112
  %v311 = vpop.permute.xlu0 %310
  %vm312 = vcmp.lt.s32.totalorder %v55, 112
  %v313 = vsel %vm312, %v309, %v311
  %v314 = vsel %vm312, %v307, %v309
  %v315 = vsel %vm312, %v305, %v307
  %v316 = vsel %vm312, %v311, %v305
  %v318 = vlaneseq
  %v319 = vshrl.u32 %v318, 7
  %v320 = vsub.s32 0, %v319
  %v321 = vrot.slane %v39, %v320
  %v322 = vlaneseq
  %v323 = vshrl.u32 %v322, 7
  %v324 = vsub.s32 1, %v323
  %v325 = vrot.slane %v39, %v324
  %v326 = vlaneseq
  %v327 = vshrl.u32 %v326, 7
  %v328 = vsub.s32 2, %v327
  %v329 = vrot.slane %v39, %v328
  %v330 = vlaneseq
  %v331 = vshrl.u32 %v330, 7
  %v332 = vsub.s32 3, %v331
  %v333 = vrot.slane %v39, %v332
  %v338 = vmul.f32 %v315, %v321
  %v339 = vmul.f32 %v314, %v325
  %v340 = vmul.f32 %v313, %v329
  %v341 = vmul.f32 %v316, %v333
  %342 = vst [vmem:[#allocation2 + $0xe0] sm:$0xff] %v338
  %343 = vst [vmem:[#allocation2 + $0xe8] sm:$0xff] %v339
  %344 = vst [vmem:[#allocation2 + $0xf0] sm:$0xff] %v340
  %345 = vst [vmem:[#allocation2 + $0xf8] sm:$0xff] %v341
  %346 = vrot.lane.b32.xlu0 %v42, 111
  %v347 = vpop.permute.xlu0 %346
  %348 = vrot.lane.b32.xlu0 %v43, 111
  %v349 = vpop.permute.xlu0 %348
  %350 = vrot.lane.b32.xlu0 %v44, 111
  %v351 = vpop.permute.xlu0 %350
  %352 = vrot.lane.b32.xlu0 %v45, 111
  %v353 = vpop.permute.xlu0 %352
  %vm354 = vcmp.lt.s32.totalorder %v55, 111
  %v355 = vsel %vm354, %v351, %v353
  %v356 = vsel %vm354, %v349, %v351
  %v357 = vsel %vm354, %v347, %v349
  %v358 = vsel %vm354, %v353, %v347
  %v360 = vlaneseq
  %v361 = vshrl.u32 %v360, 7
  %v362 = vsub.s32 0, %v361
  %v363 = vrot.slane %v41, %v362
  %v364 = vlaneseq
  %v365 = vshrl.u32 %v364, 7
  %v366 = vsub.s32 1, %v365
  %v367 = vrot.slane %v41, %v366
  %v368 = vlaneseq
  %v369 = vshrl.u32 %v368, 7
  %v370 = vsub.s32 2, %v369
  %v371 = vrot.slane %v41, %v370
  %v372 = vlaneseq
  %v373 = vshrl.u32 %v372, 7
  %v374 = vsub.s32 3, %v373
  %v375 = vrot.slane %v41, %v374
  %v380 = vmul.f32 %v357, %v363
  %v381 = vmul.f32 %v356, %v367
  %v382 = vmul.f32 %v355, %v371
  %v383 = vmul.f32 %v358, %v375
  %384 = vst [vmem:[#allocation2 + $0x100] sm:$0xff] %v380
  %385 = vst [vmem:[#allocation2 + $0x108] sm:$0xff] %v381
  %386 = vst [vmem:[#allocation2 + $0x110] sm:$0xff] %v382
  %387 = vst [vmem:[#allocation2 + $0x118] sm:$0xff] %v383
  %v388 = vld [vmem:[#allocation2] sm:$0xff]
  %v389 = vld [vmem:[#allocation2 + $0x8] sm:$0xff]
  %v390 = vld [vmem:[#allocation2 + $0x10] sm:$0xff]
  %v391 = vld [vmem:[#allocation2 + $0x18] sm:$0xff]
  %v392 = vld [vmem:[#allocation2 + $0x20] sm:$0xff]
  %v393 = vld [vmem:[#allocation2 + $0x28] sm:$0xff]
  %v394 = vld [vmem:[#allocation2 + $0x30] sm:$0xff]
  %v395 = vld [vmem:[#allocation2 + $0x38] sm:$0xff]
  %v396 = vld [vmem:[#allocation2 + $0x40] sm:$0xff]
  %v397 = vld [vmem:[#allocation2 + $0x48] sm:$0xff]
  %v398 = vld [vmem:[#allocation2 + $0x50] sm:$0xff]
  %v399 = vld [vmem:[#allocation2 + $0x58] sm:$0xff]
  %v400 = vld [vmem:[#allocation2 + $0x60] sm:$0xff]
  %v401 = vld [vmem:[#allocation2 + $0x68] sm:$0xff]
  %v402 = vld [vmem:[#allocation2 + $0x70] sm:$0xff]
  %v403 = vld [vmem:[#allocation2 + $0x78] sm:$0xff]
  %v404 = vld [vmem:[#allocation2 + $0x80] sm:$0xff]
  %v405 = vld [vmem:[#allocation2 + $0x88] sm:$0xff]
  %v406 = vld [vmem:[#allocation2 + $0x90] sm:$0xff]
  %v407 = vld [vmem:[#allocation2 + $0x98] sm:$0xff]
  %v408 = vld [vmem:[#allocation2 + $0xa0] sm:$0xff]
  %v409 = vld [vmem:[#allocation2 + $0xa8] sm:$0xff]
  %v410 = vld [vmem:[#allocation2 + $0xb0] sm:$0xff]
  %v411 = vld [vmem:[#allocation2 + $0xb8] sm:$0xff]
  %v412 = vld [vmem:[#allocation2 + $0xc0] sm:$0xff]
  %v413 = vld [vmem:[#allocation2 + $0xc8] sm:$0xff]
  %v414 = vld [vmem:[#allocation2 + $0xd0] sm:$0xff]
  %v415 = vld [vmem:[#allocation2 + $0xd8] sm:$0xff]
  %v416 = vld [vmem:[#allocation2 + $0xe0] sm:$0xff]
  %v417 = vld [vmem:[#allocation2 + $0xe8] sm:$0xff]
  %v418 = vld [vmem:[#allocation2 + $0xf0] sm:$0xff]
  %v419 = vld [vmem:[#allocation2 + $0xf8] sm:$0xff]
  %v420 = vld [vmem:[#allocation2 + $0x100] sm:$0xff]
  %v421 = vld [vmem:[#allocation2 + $0x108] sm:$0xff]
  %v422 = vld [vmem:[#allocation2 + $0x110] sm:$0xff]
  %v423 = vld [vmem:[#allocation2 + $0x118] sm:$0xff]
  %v424 = vld [vmem:[#allocation2 + $0x120] sm:$0xff]
  %v425 = vld [vmem:[#allocation2 + $0x128] sm:$0xff]
  %v426 = vld [vmem:[#allocation2 + $0x130] sm:$0xff]
  %v427 = vld [vmem:[#allocation2 + $0x138] sm:$0xff]
  %v428 = vpack.c.bf16 %v392, %v388
  %v429 = vpack.c.bf16 %v393, %v389
  %v430 = vpack.c.bf16 %v394, %v390
  %v431 = vpack.c.bf16 %v395, %v391
  %v432 = vpack.c.bf16 %v400, %v396
  %v433 = vpack.c.bf16 %v401, %v397
  %v434 = vpack.c.bf16 %v402, %v398
  %v435 = vpack.c.bf16 %v403, %v399
  %v436 = vpack.c.bf16 %v408, %v404
  %v437 = vpack.c.bf16 %v409, %v405
  %v438 = vpack.c.bf16 %v410, %v406
  %v439 = vpack.c.bf16 %v411, %v407
  %v440 = vpack.c.bf16 %v416, %v412
  %v441 = vpack.c.bf16 %v417, %v413
  %v442 = vpack.c.bf16 %v418, %v414
  %v443 = vpack.c.bf16 %v419, %v415
  %v444 = vpack.c.bf16 %v424, %v420
  %v445 = vpack.c.bf16 %v425, %v421
  %v446 = vpack.c.bf16 %v426, %v422
  %v447 = vpack.c.bf16 %v427, %v423
  %v448 = vld [vmem:[%s1] sm:$0xf]
  %vm449 = vcmask 654336
  %v451 = vsel %vm449, %v448, 0
  %453 = vmatprep.subr.bf16.mxu0 0
  %454 = vmatpush1.bf16.msra.mxu0 0
  %455 = vmatprep.subr.bf16.mxu0 0
  %456 = vmatpush1.bf16.msra.mxu0 0
  %457 = vmatprep.subr.bf16.mxu0 0
  %458 = vmatpush1.bf16.msra.mxu0 0
  %459 = vmatprep.subr.bf16.mxu0 %v445
  %460 = vmatpush1.bf16.msra.mxu0 %v444
  %461 = vmatprep.subr.bf16.mxu0 %v441
  %462 = vmatpush1.bf16.msra.mxu0 %v440
  %463 = vmatprep.subr.bf16.mxu0 %v437
  %464 = vmatpush1.bf16.msra.mxu0 %v436
  %465 = vmatprep.subr.bf16.mxu0 %v433
  %466 = vmatpush1.bf16.msra.mxu0 %v432
  %467 = vmatprep.subr.bf16.mxu0 %v429
  %468 = vmatpush1.bf16.msra.mxu0 %v428
  %469 = vmatprep.subr.bf16.mxu0 0
  %470 = vmatpush2.bf16.msra.mxu0 0
  %471 = vmatprep.subr.bf16.mxu0 0
  %472 = vmatpush2.bf16.msra.mxu0 0
  %473 = vmatprep.subr.bf16.mxu0 0
  %474 = vmatpush2.bf16.msra.mxu0 0
  %475 = vmatprep.subr.bf16.mxu0 0
  %476 = vmatpush2.bf16.msra.mxu0 0
  %477 = vmatprep.subr.bf16.mxu0 0
  %478 = vmatpush2.bf16.msra.mxu0 0
  %479 = vmatprep.subr.bf16.mxu0 0
  %480 = vmatpush2.bf16.msra.mxu0 0
  %481 = vmatprep.subr.bf16.mxu0 0
  %482 = vmatpush2.bf16.msra.mxu0 0
  %483 = vmatprep.subr.bf16.mxu0 0
  %484 = vmatpush2.bf16.msra.mxu0 0
  %485 = vmatprep.mubr.bf16.mxu0 0
  %486 = vmatmul.mubr.bf16.gmra.mxu0 %v451
  %v487 = vpop.f32.mrf.mxu0
  %v488 = vadd.f32 0.0, %v487
  %v489 = vpop.f32.mrf.mxu0
  %v490 = vadd.f32 0.0, %v489
  %v491 = vpop.f32.mrf.mxu0
  %v492 = vpop.f32.mrf.mxu0
  %493 = vdwg.mxu0
  %494 = vmatprep.subr.bf16.mxu0 0
  %495 = vmatpush1.bf16.msra.mxu0 0
  %496 = vmatprep.subr.bf16.mxu0 0
  %497 = vmatpush1.bf16.msra.mxu0 0
  %498 = vmatprep.subr.bf16.mxu0 0
  %499 = vmatpush1.bf16.msra.mxu0 0
  %500 = vmatprep.subr.bf16.mxu0 %v447
  %501 = vmatpush1.bf16.msra.mxu0 %v446
  %502 = vmatprep.subr.bf16.mxu0 %v443
  %503 = vmatpush1.bf16.msra.mxu0 %v442
  %504 = vmatprep.subr.bf16.mxu0 %v439
  %505 = vmatpush1.bf16.msra.mxu0 %v438
  %506 = vmatprep.subr.bf16.mxu0 %v435
  %507 = vmatpush1.bf16.msra.mxu0 %v434
  %508 = vmatprep.subr.bf16.mxu0 %v431
  %509 = vmatpush1.bf16.msra.mxu0 %v430
  %510 = vmatprep.subr.bf16.mxu0 0
  %511 = vmatpush2.bf16.msra.mxu0 0
  %512 = vmatprep.subr.bf16.mxu0 0
  %513 = vmatpush2.bf16.msra.mxu0 0
  %514 = vmatprep.subr.bf16.mxu0 0
  %515 = vmatpush2.bf16.msra.mxu0 0
  %516 = vmatprep.subr.bf16.mxu0 0
  %517 = vmatpush2.bf16.msra.mxu0 0
  %518 = vmatprep.subr.bf16.mxu0 0
  %519 = vmatpush2.bf16.msra.mxu0 0
  %520 = vmatprep.subr.bf16.mxu0 0
  %521 = vmatpush2.bf16.msra.mxu0 0
  %522 = vmatprep.subr.bf16.mxu0 0
  %523 = vmatpush2.bf16.msra.mxu0 0
  %524 = vmatprep.subr.bf16.mxu0 0
  %525 = vmatpush2.bf16.msra.mxu0 0
  %526 = vmatprep.mubr.bf16.mxu0 0
  %527 = vmatmul.mubr.bf16.gmra.mxu0 %v451
  %v528 = vpop.f32.mrf.mxu0
  %v529 = vadd.f32 0.0, %v528
  %v530 = vpop.f32.mrf.mxu0
  %v531 = vadd.f32 0.0, %v530
  %v532 = vpop.f32.mrf.mxu0
  %v533 = vpop.f32.mrf.mxu0
  %534 = vdwg.mxu0
  %v535 = vmax.f32 %v488, 0.0
  %v536 = vmax.f32 %v490, 0.0
  %v537 = vmax.f32 %v529, 0.0
  %v538 = vmax.f32 %v531, 0.0
  %539 = vrot.lane.b32.xlu0 %v535, 17
  %v540 = vpop.permute.xlu0 %539
  %541 = vrot.lane.b32.xlu0 %v536, 17
  %v542 = vpop.permute.xlu0 %541
  %543 = vrot.lane.b32.xlu0 %v537, 17
  %v544 = vpop.permute.xlu0 %543
  %545 = vrot.lane.b32.xlu0 %v538, 17
  %v546 = vpop.permute.xlu0 %545
  %v547 = vsel %vm56, %v544, %v546
  %v548 = vsel %vm56, %v542, %v544
  %v549 = vsel %vm56, %v540, %v542
  %v550 = vsel %vm56, %v546, %v540
  %v551 = vmul.f32 %v550, %v65
  %v552 = vmul.f32 %v549, %v69
  %v553 = vmul.f32 %v548, %v73
  %v554 = vmul.f32 %v547, %v77
  %555 = vst [vmem:[#allocation2] sm:$0xff] %v551
  %556 = vst [vmem:[#allocation2 + $0x8] sm:$0xff] %v552
  %557 = vst [vmem:[#allocation2 + $0x10] sm:$0xff] %v553
  %558 = vst [vmem:[#allocation2 + $0x18] sm:$0xff] %v554
  %559 = vrot.lane.b32.xlu0 %v535, 16
  %v560 = vpop.permute.xlu0 %559
  %561 = vrot.lane.b32.xlu0 %v536, 16
  %v562 = vpop.permute.xlu0 %561
  %563 = vrot.lane.b32.xlu0 %v537, 16
  %v564 = vpop.permute.xlu0 %563
  %565 = vrot.lane.b32.xlu0 %v538, 16
  %v566 = vpop.permute.xlu0 %565
  %v567 = vsel %vm98, %v564, %v566
  %v568 = vsel %vm98, %v562, %v564
  %v569 = vsel %vm98, %v560, %v562
  %v570 = vsel %vm98, %v566, %v560
  %v571 = vmul.f32 %v570, %v107
  %v572 = vmul.f32 %v569, %v111
  %v573 = vmul.f32 %v568, %v115
  %v574 = vmul.f32 %v567, %v119
  %575 = vst [vmem:[#allocation2 + $0x20] sm:$0xff] %v571
  %576 = vst [vmem:[#allocation2 + $0x28] sm:$0xff] %v572
  %577 = vst [vmem:[#allocation2 + $0x30] sm:$0xff] %v573
  %578 = vst [vmem:[#allocation2 + $0x38] sm:$0xff] %v574
  %579 = vrot.lane.b32.xlu0 %v535, 15
  %v580 = vpop.permute.xlu0 %579
  %581 = vrot.lane.b32.xlu0 %v536, 15
  %v582 = vpop.permute.xlu0 %581
  %583 = vrot.lane.b32.xlu0 %v537, 15
  %v584 = vpop.permute.xlu0 %583
  %585 = vrot.lane.b32.xlu0 %v538, 15
  %v586 = vpop.permute.xlu0 %585
  %v587 = vsel %vm140, %v584, %v586
  %v588 = vsel %vm140, %v582, %v584
  %v589 = vsel %vm140, %v580, %v582
  %v590 = vsel %vm140, %v586, %v580
  %v591 = vmul.f32 %v590, %v149
  %v592 = vmul.f32 %v589, %v153
  %v593 = vmul.f32 %v588, %v157
  %v594 = vmul.f32 %v587, %v161
  %595 = vst [vmem:[#allocation2 + $0x40] sm:$0xff] %v591
  %596 = vst [vmem:[#allocation2 + $0x48] sm:$0xff] %v592
  %597 = vst [vmem:[#allocation2 + $0x50] sm:$0xff] %v593
  %598 = vst [vmem:[#allocation2 + $0x58] sm:$0xff] %v594
  %599 = vrot.lane.b32.xlu0 %v535, 1
  %v600 = vpop.permute.xlu0 %599
  %601 = vrot.lane.b32.xlu0 %v536, 1
  %v602 = vpop.permute.xlu0 %601
  %603 = vrot.lane.b32.xlu0 %v537, 1
  %v604 = vpop.permute.xlu0 %603
  %605 = vrot.lane.b32.xlu0 %v538, 1
  %v606 = vpop.permute.xlu0 %605
  %v607 = vsel %vm182, %v604, %v606
  %v608 = vsel %vm182, %v602, %v604
  %v609 = vsel %vm182, %v600, %v602
  %v610 = vsel %vm182, %v606, %v600
  %v611 = vmul.f32 %v610, %v191
  %v612 = vmul.f32 %v609, %v195
  %v613 = vmul.f32 %v608, %v199
  %v614 = vmul.f32 %v607, %v203
  %615 = vst [vmem:[#allocation2 + $0x60] sm:$0xff] %v611
  %616 = vst [vmem:[#allocation2 + $0x68] sm:$0xff] %v612
  %617 = vst [vmem:[#allocation2 + $0x70] sm:$0xff] %v613
  %618 = vst [vmem:[#allocation2 + $0x78] sm:$0xff] %v614
  %619 = vst [vmem:[#allocation2 + $0x80] sm:$0xff] %v535
  %620 = vst [vmem:[#allocation2 + $0x88] sm:$0xff] %v536
  %621 = vst [vmem:[#allocation2 + $0x90] sm:$0xff] %v537
  %622 = vst [vmem:[#allocation2 + $0x98] sm:$0xff] %v538
  %623 = vrot.lane.b32.xlu0 %v535, 127
  %v624 = vpop.permute.xlu0 %623
  %625 = vrot.lane.b32.xlu0 %v536, 127
  %v626 = vpop.permute.xlu0 %625
  %627 = vrot.lane.b32.xlu0 %v537, 127
  %v628 = vpop.permute.xlu0 %627
  %629 = vrot.lane.b32.xlu0 %v538, 127
  %v630 = vpop.permute.xlu0 %629
  %v631 = vsel %vm228, %v628, %v630
  %v632 = vsel %vm228, %v626, %v628
  %v633 = vsel %vm228, %v624, %v626
  %v634 = vsel %vm228, %v630, %v624
  %v635 = vmul.f32 %v633, %v237
  %v636 = vmul.f32 %v632, %v241
  %v637 = vmul.f32 %v631, %v245
  %v638 = vmul.f32 %v634, %v249
  %639 = vst [vmem:[#allocation2 + $0xa0] sm:$0xff] %v635
  %640 = vst [vmem:[#allocation2 + $0xa8] sm:$0xff] %v636
  %641 = vst [vmem:[#allocation2 + $0xb0] sm:$0xff] %v637
  %642 = vst [vmem:[#allocation2 + $0xb8] sm:$0xff] %v638
  %643 = vrot.lane.b32.xlu0 %v535, 113
  %v644 = vpop.permute.xlu0 %643
  %645 = vrot.lane.b32.xlu0 %v536, 113
  %v646 = vpop.permute.xlu0 %645
  %647 = vrot.lane.b32.xlu0 %v537, 113
  %v648 = vpop.permute.xlu0 %647
  %649 = vrot.lane.b32.xlu0 %v538, 113
  %v650 = vpop.permute.xlu0 %649
  %v651 = vsel %vm270, %v648, %v650
  %v652 = vsel %vm270, %v646, %v648
  %v653 = vsel %vm270, %v644, %v646
  %v654 = vsel %vm270, %v650, %v644
  %v655 = vmul.f32 %v653, %v279
  %v656 = vmul.f32 %v652, %v283
  %v657 = vmul.f32 %v651, %v287
  %v658 = vmul.f32 %v654, %v291
  %659 = vst [vmem:[#allocation2 + $0xc0] sm:$0xff] %v655
  %660 = vst [vmem:[#allocation2 + $0xc8] sm:$0xff] %v656
  %661 = vst [vmem:[#allocation2 + $0xd0] sm:$0xff] %v657
  %662 = vst [vmem:[#allocation2 + $0xd8] sm:$0xff] %v658
  %663 = vrot.lane.b32.xlu0 %v535, 112
  %v664 = vpop.permute.xlu0 %663
  %665 = vrot.lane.b32.xlu0 %v536, 112
  %v666 = vpop.permute.xlu0 %665
  %667 = vrot.lane.b32.xlu0 %v537, 112
  %v668 = vpop.permute.xlu0 %667
  %669 = vrot.lane.b32.xlu0 %v538, 112
  %v670 = vpop.permute.xlu0 %669
  %v671 = vsel %vm312, %v668, %v670
  %v672 = vsel %vm312, %v666, %v668
  %v673 = vsel %vm312, %v664, %v666
  %v674 = vsel %vm312, %v670, %v664
  %v675 = vmul.f32 %v673, %v321
  %v676 = vmul.f32 %v672, %v325
  %v677 = vmul.f32 %v671, %v329
  %v678 = vmul.f32 %v674, %v333
  %679 = vst [vmem:[#allocation2 + $0xe0] sm:$0xff] %v675
  %680 = vst [vmem:[#allocation2 + $0xe8] sm:$0xff] %v676
  %681 = vst [vmem:[#allocation2 + $0xf0] sm:$0xff] %v677
  %682 = vst [vmem:[#allocation2 + $0xf8] sm:$0xff] %v678
  %683 = vrot.lane.b32.xlu0 %v535, 111
  %v684 = vpop.permute.xlu0 %683
  %685 = vrot.lane.b32.xlu0 %v536, 111
  %v686 = vpop.permute.xlu0 %685
  %687 = vrot.lane.b32.xlu0 %v537, 111
  %v688 = vpop.permute.xlu0 %687
  %689 = vrot.lane.b32.xlu0 %v538, 111
  %v690 = vpop.permute.xlu0 %689
  %v691 = vsel %vm354, %v688, %v690
  %v692 = vsel %vm354, %v686, %v688
  %v693 = vsel %vm354, %v684, %v686
  %v694 = vsel %vm354, %v690, %v684
  %v695 = vmul.f32 %v693, %v363
  %v696 = vmul.f32 %v692, %v367
  %v697 = vmul.f32 %v691, %v371
  %v698 = vmul.f32 %v694, %v375
  %699 = vst [vmem:[#allocation2 + $0x100] sm:$0xff] %v695
  %700 = vst [vmem:[#allocation2 + $0x108] sm:$0xff] %v696
  %701 = vst [vmem:[#allocation2 + $0x110] sm:$0xff] %v697
  %702 = vst [vmem:[#allocation2 + $0x118] sm:$0xff] %v698
  %v703 = vld [vmem:[#allocation2] sm:$0xff]
  %v704 = vld [vmem:[#allocation2 + $0x8] sm:$0xff]
  %v705 = vld [vmem:[#allocation2 + $0x10] sm:$0xff]
  %v706 = vld [vmem:[#allocation2 + $0x18] sm:$0xff]
  %v707 = vld [vmem:[#allocation2 + $0x20] sm:$0xff]
  %v708 = vld [vmem:[#allocation2 + $0x28] sm:$0xff]
  %v709 = vld [vmem:[#allocation2 + $0x30] sm:$0xff]
  %v710 = vld [vmem:[#allocation2 + $0x38] sm:$0xff]
  %v711 = vld [vmem:[#allocation2 + $0x40] sm:$0xff]
  %v712 = vld [vmem:[#allocation2 + $0x48] sm:$0xff]
  %v713 = vld [vmem:[#allocation2 + $0x50] sm:$0xff]
  %v714 = vld [vmem:[#allocation2 + $0x58] sm:$0xff]
  %v715 = vld [vmem:[#allocation2 + $0x60] sm:$0xff]
  %v716 = vld [vmem:[#allocation2 + $0x68] sm:$0xff]
  %v717 = vld [vmem:[#allocation2 + $0x70] sm:$0xff]
  %v718 = vld [vmem:[#allocation2 + $0x78] sm:$0xff]
  %v719 = vld [vmem:[#allocation2 + $0x80] sm:$0xff]
  %v720 = vld [vmem:[#allocation2 + $0x88] sm:$0xff]
  %v721 = vld [vmem:[#allocation2 + $0x90] sm:$0xff]
  %v722 = vld [vmem:[#allocation2 + $0x98] sm:$0xff]
  %v723 = vld [vmem:[#allocation2 + $0xa0] sm:$0xff]
  %v724 = vld [vmem:[#allocation2 + $0xa8] sm:$0xff]
  %v725 = vld [vmem:[#allocation2 + $0xb0] sm:$0xff]
  %v726 = vld [vmem:[#allocation2 + $0xb8] sm:$0xff]
  %v727 = vld [vmem:[#allocation2 + $0xc0] sm:$0xff]
  %v728 = vld [vmem:[#allocation2 + $0xc8] sm:$0xff]
  %v729 = vld [vmem:[#allocation2 + $0xd0] sm:$0xff]
  %v730 = vld [vmem:[#allocation2 + $0xd8] sm:$0xff]
  %v731 = vld [vmem:[#allocation2 + $0xe0] sm:$0xff]
  %v732 = vld [vmem:[#allocation2 + $0xe8] sm:$0xff]
  %v733 = vld [vmem:[#allocation2 + $0xf0] sm:$0xff]
  %v734 = vld [vmem:[#allocation2 + $0xf8] sm:$0xff]
  %v735 = vld [vmem:[#allocation2 + $0x100] sm:$0xff]
  %v736 = vld [vmem:[#allocation2 + $0x108] sm:$0xff]
  %v737 = vld [vmem:[#allocation2 + $0x110] sm:$0xff]
  %v738 = vld [vmem:[#allocation2 + $0x118] sm:$0xff]
  %v739 = vld [vmem:[#allocation2 + $0x120] sm:$0xff]
  %v740 = vld [vmem:[#allocation2 + $0x128] sm:$0xff]
  %v741 = vld [vmem:[#allocation2 + $0x130] sm:$0xff]
  %v742 = vld [vmem:[#allocation2 + $0x138] sm:$0xff]
  %v743 = vpack.c.bf16 %v707, %v703
  %v744 = vpack.c.bf16 %v708, %v704
  %v745 = vpack.c.bf16 %v709, %v705
  %v746 = vpack.c.bf16 %v710, %v706
  %v747 = vpack.c.bf16 %v715, %v711
  %v748 = vpack.c.bf16 %v716, %v712
  %v749 = vpack.c.bf16 %v717, %v713
  %v750 = vpack.c.bf16 %v718, %v714
  %v751 = vpack.c.bf16 %v723, %v719
  %v752 = vpack.c.bf16 %v724, %v720
  %v753 = vpack.c.bf16 %v725, %v721
  %v754 = vpack.c.bf16 %v726, %v722
  %v755 = vpack.c.bf16 %v731, %v727
  %v756 = vpack.c.bf16 %v732, %v728
  %v757 = vpack.c.bf16 %v733, %v729
  %v758 = vpack.c.bf16 %v734, %v730
  %v759 = vpack.c.bf16 %v739, %v735
  %v760 = vpack.c.bf16 %v740, %v736
  %v761 = vpack.c.bf16 %v741, %v737
  %v762 = vpack.c.bf16 %v742, %v738
  %v763 = vld [vmem:[%s2] sm:$0xf]
  %v765 = vsel %vm449, %v763, 0
  %767 = vmatprep.subr.bf16.mxu0 0
  %768 = vmatpush1.bf16.msra.mxu0 0
  %769 = vmatprep.subr.bf16.mxu0 0
  %770 = vmatpush1.bf16.msra.mxu0 0
  %771 = vmatprep.subr.bf16.mxu0 0
  %772 = vmatpush1.bf16.msra.mxu0 0
  %773 = vmatprep.subr.bf16.mxu0 %v760
  %774 = vmatpush1.bf16.msra.mxu0 %v759
  %775 = vmatprep.subr.bf16.mxu0 %v756
  %776 = vmatpush1.bf16.msra.mxu0 %v755
  %777 = vmatprep.subr.bf16.mxu0 %v752
  %778 = vmatpush1.bf16.msra.mxu0 %v751
  %779 = vmatprep.subr.bf16.mxu0 %v748
  %780 = vmatpush1.bf16.msra.mxu0 %v747
  %781 = vmatprep.subr.bf16.mxu0 %v744
  %782 = vmatpush1.bf16.msra.mxu0 %v743
  %783 = vmatprep.subr.bf16.mxu0 0
  %784 = vmatpush2.bf16.msra.mxu0 0
  %785 = vmatprep.subr.bf16.mxu0 0
  %786 = vmatpush2.bf16.msra.mxu0 0
  %787 = vmatprep.subr.bf16.mxu0 0
  %788 = vmatpush2.bf16.msra.mxu0 0
  %789 = vmatprep.subr.bf16.mxu0 0
  %790 = vmatpush2.bf16.msra.mxu0 0
  %791 = vmatprep.subr.bf16.mxu0 0
  %792 = vmatpush2.bf16.msra.mxu0 0
  %793 = vmatprep.subr.bf16.mxu0 0
  %794 = vmatpush2.bf16.msra.mxu0 0
  %795 = vmatprep.subr.bf16.mxu0 0
  %796 = vmatpush2.bf16.msra.mxu0 0
  %797 = vmatprep.subr.bf16.mxu0 0
  %798 = vmatpush2.bf16.msra.mxu0 0
  %799 = vmatprep.mubr.bf16.mxu0 0
  %800 = vmatmul.mubr.bf16.gmra.mxu0 %v765
  %v801 = vpop.f32.mrf.mxu0
  %v802 = vadd.f32 0.0, %v801
  %v803 = vpop.f32.mrf.mxu0
  %v804 = vadd.f32 0.0, %v803
  %v805 = vpop.f32.mrf.mxu0
  %v806 = vpop.f32.mrf.mxu0
  %807 = vdwg.mxu0
  %808 = vmatprep.subr.bf16.mxu0 0
  %809 = vmatpush1.bf16.msra.mxu0 0
  %810 = vmatprep.subr.bf16.mxu0 0
  %811 = vmatpush1.bf16.msra.mxu0 0
  %812 = vmatprep.subr.bf16.mxu0 0
  %813 = vmatpush1.bf16.msra.mxu0 0
  %814 = vmatprep.subr.bf16.mxu0 %v762
  %815 = vmatpush1.bf16.msra.mxu0 %v761
  %816 = vmatprep.subr.bf16.mxu0 %v758
  %817 = vmatpush1.bf16.msra.mxu0 %v757
  %818 = vmatprep.subr.bf16.mxu0 %v754
  %819 = vmatpush1.bf16.msra.mxu0 %v753
  %820 = vmatprep.subr.bf16.mxu0 %v750
  %821 = vmatpush1.bf16.msra.mxu0 %v749
  %822 = vmatprep.subr.bf16.mxu0 %v746
  %823 = vmatpush1.bf16.msra.mxu0 %v745
  %824 = vmatprep.subr.bf16.mxu0 0
  %825 = vmatpush2.bf16.msra.mxu0 0
  %826 = vmatprep.subr.bf16.mxu0 0
  %827 = vmatpush2.bf16.msra.mxu0 0
  %828 = vmatprep.subr.bf16.mxu0 0
  %829 = vmatpush2.bf16.msra.mxu0 0
  %830 = vmatprep.subr.bf16.mxu0 0
  %831 = vmatpush2.bf16.msra.mxu0 0
  %832 = vmatprep.subr.bf16.mxu0 0
  %833 = vmatpush2.bf16.msra.mxu0 0
  %834 = vmatprep.subr.bf16.mxu0 0
  %835 = vmatpush2.bf16.msra.mxu0 0
  %836 = vmatprep.subr.bf16.mxu0 0
  %837 = vmatpush2.bf16.msra.mxu0 0
  %838 = vmatprep.subr.bf16.mxu0 0
  %839 = vmatpush2.bf16.msra.mxu0 0
  %840 = vmatprep.mubr.bf16.mxu0 0
  %841 = vmatmul.mubr.bf16.gmra.mxu0 %v765
  %v842 = vpop.f32.mrf.mxu0
  %v843 = vadd.f32 0.0, %v842
  %v844 = vpop.f32.mrf.mxu0
  %v845 = vadd.f32 0.0, %v844
  %v846 = vpop.f32.mrf.mxu0
  %v847 = vpop.f32.mrf.mxu0
  %848 = vdwg.mxu0
  %849 = vst [vmem:[%s4] sm:$0xff] %v802
  %850 = vst [vmem:[%s4 + $0x8] sm:$0xff] %v804
  %851 = vst [vmem:[%s4 + $0x10] sm:$0xff] %v843
  %852 = vst [vmem:[%s4 + $0x18] sm:$0xff] %v845
  // Predicated region
  $region18: #{block_forward_pallas.1} parent=0 // pred_check
    _
  $region19: #{block_forward_pallas.1} parent=0 // pred_check_branch
    %854 = sbr.rel (0) target = $region21
  $region20: #{block_forward_pallas.1} parent=0 // pred_region
    _
  $region21: #{block_forward_pallas.1} parent=0 // pred_fallthru
    _
  // Predicated region
  $region22: #{block_forward_pallas.1} parent=0 // pred_check
    _
  $region23: #{block_forward_pallas.1} parent=0 // pred_check_branch
    %856 = sbr.rel (0) target = $region25
  $region24: #{block_forward_pallas.1} parent=0 // pred_region
    _
  $region25: #{block_forward_pallas.1} parent=0 // pred_fallthru
    _

</llo_original>
